<compile_context>
chip_gen: v5e
topology: v5e:2x2
jax: 0.10.0
libtpu: 0.0.40
codegen_flags: <defaults>
</compile_context>

<pallas_src>
import functools

import jax
import jax.numpy as jnp
from jax.experimental import pallas as pl
from jax.experimental.pallas import tpu as pltpu


def _round_up(v, m):
    return ((v + m - 1) // m) * m


def _default_vmem_limit():
    """Scoped-VMEM limit with headroom under physical capacity.

    v5e/v6e have 128 MiB physical VMEM, v7x only 64 MiB; the fallback (48 MiB)
    is safe on every generation.
    """
    try:
        cap = int(pltpu.get_tpu_info().vmem_capacity_bytes)
    except Exception:  # query unavailable -> conservative default
        cap = 64 * 1024 * 1024
    return int(min(max(cap - 16 * 1024 * 1024, 32 * 1024 * 1024),
                   100 * 1024 * 1024))


_VMEM_LIMIT = _default_vmem_limit()


def _dilate_flat(seed_ref, *, block_size, W, n_pix):
    """Dilated drop mask (1.0 = dropped) for one tile, in flat (H*W) layout.

    seed_ref: (T, F) int8 -- per image the (H, W) canvas with the Bernoulli seeds
    anchored bottom-right (rows/cols >= block_size-1), flattened row-major and
    zero-tail-padded to F >= H*W + (block_size-1)*(W+1).

    In that layout the top-left anchored bs x bs dilation is
        dil[i] = max_{a,b in [0,bs)} seed_flat[i + a*W + b]
    and every flat read that crosses a row boundary lands either in the
    always-zero first (bs-1) columns of the next row or in the zero tail, so
    plain lane shifts are exact.  Computed separably: bs shifts for the W
    direction, then bs row-stride shifts for the H direction.

    Returns (T, n_pix) float32 with values in {0.0, 1.0}.  (The DMA stays int8;
    compute is widened to f32 for robust lowering of the unaligned lane slices.)
    """
    pad = block_size - 1
    m = n_pix + pad * W
    sf = seed_ref[...].astype(jnp.float32)          # (T, F)
    row = sf[:, 0:m]
    for b in range(1, block_size):
        row = jnp.maximum(row, sf[:, b:b + m])      # W-direction window
    dil = row[:, 0:n_pix]
    for a in range(1, block_size):
        dil = jnp.maximum(dil, row[:, a * W:a * W + n_pix])   # H-direction window
    return dil


def _count_kernel(seed_ref, cnt_ref, *, block_size, W, n_pix, bc_total, tile_bc):
    """Pass 1: per-grid-step partial count of dropped positions (int32)."""
    dil = _dilate_flat(seed_ref, block_size=block_size, W=W, n_pix=n_pix)
    per_row = jnp.sum(dil, axis=1, keepdims=True)                     # (T, 1) f32
    # Mask rows of a partial last block (cdiv grid over B*C).
    rows = (pl.program_id(0) * tile_bc
            + jax.lax.broadcasted_iota(jnp.int32, per_row.shape, 0))
    per_row = jnp.where(rows < bc_total, per_row, 0.0)
    total = jnp.sum(per_row, axis=0, keepdims=True)                   # (1, 1) f32
    cnt_ref[0] = total.astype(jnp.int32)     # exact: per-tile count < 2**24


def _apply_kernel(scale_ref, seed_ref, x_ref, o_ref, *, block_size, W, n_pix):
    """Pass 2: out = where(dropped, 0, x * scale); scale applied in f32."""
    dil = _dilate_flat(seed_ref, block_size=block_size, W=W, n_pix=n_pix)
    kept = x_ref[...].astype(jnp.float32) * scale_ref[0]              # scale from SMEM
    o_ref[...] = jnp.where(dil > 0.0, 0.0, kept).astype(o_ref.dtype)


def _pick_tile_bc(bc, n_pix, flat_len, x_itemsize, pad_row, vmem_limit):
    """Largest B*C tile whose pass-2 footprint fits the VMEM budget.

    Per-image footprint = double-buffered pipeline blocks (x-in + out in x's
    dtype, int8 seeds) + single-buffered f32 in-kernel temporaries (widened
    seeds, row-max, dilated mask, f32 x).
    """
    m = n_pix + pad_row
    blocks = 2 * (2 * n_pix * x_itemsize + flat_len)
    temps = 4 * (flat_len + m + 2 * n_pix)
    per_img = blocks + temps
    budget = (vmem_limit * 3) // 5            # ~40% headroom for compiler scratch
    max_fit = max(1, budget // per_img)
    if max_fit >= bc or bc <= 8:
        return bc
    return max(8, (int(max_fit) // 8) * 8)    # sublane-aligned when tiling B*C


@functools.partial(jax.jit, static_argnums=(2, 3, 4))
def dropblock_forward(x, mask_seeds, block_size, training=True, tile_bc=None):
    """DropBlock forward. x: (B, C, H, W); mask_seeds: (B, C, H-bs+1, W-bs+1)."""
    if not training:
        return x

    B, C, H, W = x.shape
    pad = block_size - 1
    Hs, Ws = H - pad, W - pad
    assert Hs > 0 and Ws > 0, (H, W, block_size)
    assert mask_seeds.shape == (B, C, Hs, Ws), mask_seeds.shape
    BC = B * C
    N = H * W
    # Flat padded seed length: the dilation reads up to pad*W + pad lanes ahead.
    F = _round_up(N + pad * (W + 1), 128)

    # ---- Tiny XLA-side prep on the int8 seeds (x itself is only reshaped). ----
    x2 = x.reshape(BC, N)                                        # metadata-only
    seeds = mask_seeds.astype(jnp.int8).reshape(BC, Hs, Ws)
    spad = jnp.pad(seeds, ((0, 0), (pad, 0), (pad, 0)))          # (BC, H, W), bottom-right anchor
    sflat = jnp.pad(spad.reshape(BC, N), ((0, 0), (0, F - N)))   # (BC, F), zero tail

    if tile_bc is None:
        tile_bc = _pick_tile_bc(BC, N, F, jnp.dtype(x.dtype).itemsize, pad * W,
                                _VMEM_LIMIT)
    assert 0 < tile_bc <= BC and (tile_bc == BC or tile_bc % 8 == 0), tile_bc
    num_tiles = (BC + tile_bc - 1) // tile_bc        # cdiv: BC need not divide

    # ---- Pass 1: per-tile dropped-position counts (reads only int8 seeds). ----
    counts = pl.pallas_call(
        functools.partial(_count_kernel, block_size=block_size, W=W, n_pix=N,
                          bc_total=BC, tile_bc=tile_bc),
        out_shape=jax.ShapeDtypeStruct((num_tiles, 1, 1), jnp.int32),
        grid=(num_tiles,),
        in_specs=[pl.BlockSpec((tile_bc, F), lambda i: (i, 0))],
        out_specs=pl.BlockSpec((1, 1, 1), lambda i: (i, 0, 0)),
        compiler_params=pltpu.CompilerParams(
            dimension_semantics=("parallel",),       # both TCs on v7x
            vmem_limit_bytes=_VMEM_LIMIT),
    )(sflat)

    dropped = jnp.sum(counts).astype(jnp.float32)
    count_m = jnp.float32(BC * N)
    # NOTE: the PyTorch module divides by count_ones unguarded; the max(., 1)
    # only deviates in the degenerate all-dropped case (avoids inf/NaN scale).
    scale = count_m / jnp.maximum(count_m - dropped, jnp.float32(1.0))
    scale = scale.reshape(1).astype(jnp.float32)

    # ---- Pass 2: streaming lane-dense apply  out = where(dropped, 0, x*scale). ----
    out2 = pl.pallas_call(
        functools.partial(_apply_kernel, block_size=block_size, W=W, n_pix=N),
        out_shape=jax.ShapeDtypeStruct((BC, N), x.dtype),
        grid=(num_tiles,),
        in_specs=[
            pl.BlockSpec(memory_space=pltpu.MemorySpace.SMEM),   # scale, (1,) f32
            pl.BlockSpec((tile_bc, F), lambda i: (i, 0)),        # seeds, int8
            pl.BlockSpec((tile_bc, N), lambda i: (i, 0)),        # x
        ],
        out_specs=pl.BlockSpec((tile_bc, N), lambda i: (i, 0)),
        compiler_params=pltpu.CompilerParams(
            dimension_semantics=("parallel",),
            vmem_limit_bytes=_VMEM_LIMIT),
    )(scale, sflat, x2)

    return out2.reshape(B, C, H, W)


def _dropblock_reference(x, mask_seeds, block_size):
    """Pure-JAX reference mirroring the PyTorch module (for verification)."""
    B, C, H, W = x.shape
    pad = block_size - 1
    Hs, Ws = mask_seeds.shape[2], mask_seeds.shape[3]
    mpad = jnp.zeros((B, C, H + pad, W + pad), jnp.float32)
    mpad = mpad.at[:, :, pad:pad + Hs, pad:pad + Ws].set(
        mask_seeds.astype(jnp.float32))
    dil = jnp.zeros((B, C, H, W), jnp.float32)
    for a in range(block_size):
        for b in range(block_size):
            dil = jnp.maximum(dil, mpad[:, :, a:a + H, b:b + W])
    block_mask = 1.0 - dil
    count_m = B * C * H * W
    return block_mask * x * (count_m / jnp.sum(block_mask))


if __name__ == "__main__":
    key = jax.random.PRNGKey(0)
    kx, km, kx2, km2, kx3, km3 = jax.random.split(key, 6)

    # --- Case 1: f32, canonical small shape, auto tiling (single block). ---
    block_size = 3
    gamma = 0.1
    B, C, H, W = 2, 4, 16, 16
    x = jax.random.normal(kx, (B, C, H, W), dtype=jnp.float32)
    seeds = jax.random.bernoulli(
        km, gamma, (B, C, H - block_size + 1, W - block_size + 1))
    ref = _dropblock_reference(x, seeds, block_size)
    out = jax.block_until_ready(dropblock_forward(x, seeds, block_size))
    assert out.shape == x.shape and out.dtype == x.dtype
    assert jnp.allclose(out, ref, rtol=1e-5, atol=1e-5), \
        float(jnp.max(jnp.abs(out - ref)))

    # --- Case 2: multi-tile cdiv grid with a partial last block, block_size=5. ---
    bs2 = 5
    B2, C2 = 2, 10                       # BC = 20, tile_bc = 8 -> 3 tiles, last partial
    x2 = jax.random.normal(kx2, (B2, C2, H, W), dtype=jnp.float32)
    seeds2 = jax.random.bernoulli(
        km2, 0.2, (B2, C2, H - bs2 + 1, W - bs2 + 1))
    ref2 = _dropblock_reference(x2, seeds2, bs2)
    out2 = jax.block_until_ready(dropblock_forward(x2, seeds2, bs2, True, 8))
    assert jnp.allclose(out2, ref2, rtol=1e-5, atol=1e-5)

    # --- Case 3: bf16 activations (scale applied in f32 in-kernel). ---
    x3 = jax.random.normal(kx3, (B, C, H, W), dtype=jnp.bfloat16)
    seeds3 = jax.random.bernoulli(
        km3, gamma, (B, C, H - block_size + 1, W - block_size + 1))
    ref3 = _dropblock_reference(x3.astype(jnp.float32), seeds3, block_size)
    out3 = jax.block_until_ready(dropblock_forward(x3, seeds3, block_size))
    assert out3.dtype == jnp.bfloat16
    assert jnp.allclose(out3.astype(jnp.float32), ref3, rtol=2e-2, atol=2e-2)

    # --- Eval mode is identity. ---
    assert jnp.array_equal(dropblock_forward(x, seeds, block_size, False), x)

    print("KERNEL_OK")
</pallas_src>

<mosaic_0001>
module attributes {stable_mosaic.version = 11 : i64} {
  func.func @_count_kernel(%arg0: i32, %arg1: memref<8x384xi8, #tpu.memory_space<vmem>>, %arg2: memref<1x1x1xi32, #tpu.memory_space<vmem>>) attributes {dimension_semantics = [#tpu.dimension_semantics<parallel>], iteration_bounds = array<i64: 1>, scalar_prefetch = 0 : i64, scratch_operands = 0 : i64, tpu.core_type = #tpu.core_type<tc>, window_params = [{transform_indices = @transform_0, window_bounds = array<i64: 8, 384>}, {transform_indices = @transform_1, window_bounds = array<i64: 1, 1, 1>}]} {
    %c0 = arith.constant 0 : index
    %c0_0 = arith.constant 0 : index
    %0 = vector.load %arg1[%c0, %c0_0] : memref<8x384xi8, #tpu.memory_space<vmem>>, vector<8x384xi8>
    %1 = arith.sitofp %0 : vector<8x384xi8> to vector<8x384xf32>
    %2 = vector.extract_strided_slice %1 {offsets = [0, 0], sizes = [8, 288], strides = [1, 1]} : vector<8x384xf32> to vector<8x288xf32>
    %3 = vector.extract_strided_slice %1 {offsets = [0, 1], sizes = [8, 288], strides = [1, 1]} : vector<8x384xf32> to vector<8x288xf32>
    %4 = arith.maximumf %2, %3 : vector<8x288xf32>
    %5 = vector.extract_strided_slice %1 {offsets = [0, 2], sizes = [8, 288], strides = [1, 1]} : vector<8x384xf32> to vector<8x288xf32>
    %6 = arith.maximumf %4, %5 : vector<8x288xf32>
    %7 = vector.extract_strided_slice %6 {offsets = [0, 0], sizes = [8, 256], strides = [1, 1]} : vector<8x288xf32> to vector<8x256xf32>
    %8 = vector.extract_strided_slice %6 {offsets = [0, 16], sizes = [8, 256], strides = [1, 1]} : vector<8x288xf32> to vector<8x256xf32>
    %9 = arith.maximumf %7, %8 : vector<8x256xf32>
    %10 = vector.extract_strided_slice %6 {offsets = [0, 32], sizes = [8, 256], strides = [1, 1]} : vector<8x288xf32> to vector<8x256xf32>
    %11 = arith.maximumf %9, %10 : vector<8x256xf32>
    %cst = arith.constant dense<0.000000e+00> : vector<8xf32>
    %12 = vector.multi_reduction <add>, %11, %cst [1] : vector<8x256xf32> to vector<8xf32>
    %13 = vector.shape_cast %12 : vector<8xf32> to vector<8x1xf32>
    %c8_i32 = arith.constant 8 : i32
    %14 = arith.muli %arg0, %c8_i32 : i32
    %15 = tpu.iota {dimensions = array<i32: 0>} : vector<8x1xi32>
    %16 = vector.broadcast %14 : i32 to vector<8x1xi32>
    %17 = arith.addi %16, %15 : vector<8x1xi32>
    %c8_i32_1 = arith.constant 8 : i32
    %18 = vector.broadcast %c8_i32_1 : i32 to vector<8x1xi32>
    %19 = arith.cmpi slt, %17, %18 : vector<8x1xi32>
    %cst_2 = arith.constant 0.000000e+00 : f32
    %20 = vector.broadcast %cst_2 : f32 to vector<8x1xf32>
    %21 = arith.select %19, %13, %20 : vector<8x1xi1>, vector<8x1xf32>
    %cst_3 = arith.constant dense<0.000000e+00> : vector<1xf32>
    %22 = vector.multi_reduction <add>, %21, %cst_3 [0] : vector<8x1xf32> to vector<1xf32>
    %23 = vector.shape_cast %22 : vector<1xf32> to vector<1x1xf32>
    %24 = arith.fptosi %23 : vector<1x1xf32> to vector<1x1xi32>
    %c0_4 = arith.constant 0 : index
    %c0_5 = arith.constant 0 : index
    %c0_6 = arith.constant 0 : index
    %25 = vector.load %arg2[%c0_4, %c0_5, %c0_6] : memref<1x1x1xi32, #tpu.memory_space<vmem>>, vector<1x1x1xi32>
    %26 = vector.shape_cast %25 : vector<1x1x1xi32> to vector<1x1xi32>
    %27 = vector.shape_cast %24 : vector<1x1xi32> to vector<1x1x1xi32>
    tpu.vector_store %arg2[%c0_4, %c0_5, %c0_6], %27 {strides = array<i32>} : memref<1x1x1xi32, #tpu.memory_space<vmem>>, vector<1x1x1xi32>,
    return
  }
  func.func @transform_0(%arg0: i32) -> (i32, i32) {
    %c0_i32 = arith.constant 0 : i32
    %c0_i32_0 = arith.constant 0 : i32
    return %arg0, %c0_i32 : i32, i32
  }
  func.func @transform_1(%arg0: i32) -> (i32, i32, i32) {
    %c0_i32 = arith.constant 0 : i32
    %c0_i32_0 = arith.constant 0 : i32
    %c0_i32_1 = arith.constant 0 : i32
    return %arg0, %c0_i32, %c0_i32_0 : i32, i32, i32
  }
}

module attributes {stable_mosaic.version = 11 : i64} {
  func.func @_apply_kernel(%arg0: i32, %arg1: memref<1xf32, #tpu.memory_space<smem>>, %arg2: memref<8x384xi8, #tpu.memory_space<vmem>>, %arg3: memref<8x256xf32, #tpu.memory_space<vmem>>, %arg4: memref<8x256xf32, #tpu.memory_space<vmem>>) attributes {dimension_semantics = [#tpu.dimension_semantics<parallel>], iteration_bounds = array<i64: 1>, scalar_prefetch = 0 : i64, scratch_operands = 0 : i64, tpu.core_type = #tpu.core_type<tc>, window_params = [{transform_indices = @transform_0, window_bounds = array<i64: 1>}, {transform_indices = @transform_1, window_bounds = array<i64: 8, 384>}, {transform_indices = @transform_2, window_bounds = array<i64: 8, 256>}, {transform_indices = @transform_3, window_bounds = array<i64: 8, 256>}]} {
    %c0 = arith.constant 0 : index
    %c0_0 = arith.constant 0 : index
    %0 = vector.load %arg2[%c0, %c0_0] : memref<8x384xi8, #tpu.memory_space<vmem>>, vector<8x384xi8>
    %1 = arith.sitofp %0 : vector<8x384xi8> to vector<8x384xf32>
    %2 = vector.extract_strided_slice %1 {offsets = [0, 0], sizes = [8, 288], strides = [1, 1]} : vector<8x384xf32> to vector<8x288xf32>
    %3 = vector.extract_strided_slice %1 {offsets = [0, 1], sizes = [8, 288], strides = [1, 1]} : vector<8x384xf32> to vector<8x288xf32>
    %4 = arith.maximumf %2, %3 : vector<8x288xf32>
    %5 = vector.extract_strided_slice %1 {offsets = [0, 2], sizes = [8, 288], strides = [1, 1]} : vector<8x384xf32> to vector<8x288xf32>
    %6 = arith.maximumf %4, %5 : vector<8x288xf32>
    %7 = vector.extract_strided_slice %6 {offsets = [0, 0], sizes = [8, 256], strides = [1, 1]} : vector<8x288xf32> to vector<8x256xf32>
    %8 = vector.extract_strided_slice %6 {offsets = [0, 16], sizes = [8, 256], strides = [1, 1]} : vector<8x288xf32> to vector<8x256xf32>
    %9 = arith.maximumf %7, %8 : vector<8x256xf32>
    %10 = vector.extract_strided_slice %6 {offsets = [0, 32], sizes = [8, 256], strides = [1, 1]} : vector<8x288xf32> to vector<8x256xf32>
    %11 = arith.maximumf %9, %10 : vector<8x256xf32>
    %c0_1 = arith.constant 0 : index
    %c0_2 = arith.constant 0 : index
    %12 = vector.load %arg3[%c0_1, %c0_2] : memref<8x256xf32, #tpu.memory_space<vmem>>, vector<8x256xf32>
    %c0_3 = arith.constant 0 : index
    %13 = memref.load %arg1[%c0_3] : memref<1xf32, #tpu.memory_space<smem>>
    %14 = vector.broadcast %13 : f32 to vector<8x256xf32>
    %15 = arith.mulf %12, %14 : vector<8x256xf32>
    %cst = arith.constant 0.000000e+00 : f32
    %16 = vector.broadcast %cst : f32 to vector<8x256xf32>
    %17 = arith.cmpf ogt, %11, %16 : vector<8x256xf32>
    %cst_4 = arith.constant 0.000000e+00 : f32
    %18 = vector.broadcast %cst_4 : f32 to vector<8x256xf32>
    %19 = arith.select %17, %18, %15 : vector<8x256xi1>, vector<8x256xf32>
    %c0_5 = arith.constant 0 : index
    %c0_6 = arith.constant 0 : index
    %20 = vector.load %arg4[%c0_5, %c0_6] : memref<8x256xf32, #tpu.memory_space<vmem>>, vector<8x256xf32>
    tpu.vector_store %arg4[%c0_5, %c0_6], %19 {strides = array<i32>} : memref<8x256xf32, #tpu.memory_space<vmem>>, vector<8x256xf32>,
    return
  }
  func.func @transform_0(%arg0: i32) -> i32 {
    %c0_i32 = arith.constant 0 : i32
    %c0_i32_0 = arith.constant 0 : i32
    return %c0_i32 : i32
  }
  func.func @transform_1(%arg0: i32) -> (i32, i32) {
    %c0_i32 = arith.constant 0 : i32
    %c0_i32_0 = arith.constant 0 : i32
    return %arg0, %c0_i32 : i32, i32
  }
  func.func @transform_2(%arg0: i32) -> (i32, i32) {
    %c0_i32 = arith.constant 0 : i32
    %c0_i32_0 = arith.constant 0 : i32
    return %arg0, %c0_i32 : i32, i32
  }
  func.func @transform_3(%arg0: i32) -> (i32, i32) {
    %c0_i32 = arith.constant 0 : i32
    %c0_i32_0 = arith.constant 0 : i32
    return %arg0, %c0_i32 : i32, i32
  }
}

</mosaic_0001>

<llo_original>
// kernel: dropblock_forward.3
$region0: #{dropblock_forward.3}
  #allocation0 [shape = 'u32[]', space=smem, size = 0x4, offset = 0x4, fixed_abs, tag = 'smem constant byte address 0x4 - core index']
  #allocation1 [shape = 'u32[72,128]{1,0:T(1,128)}', space=vmem, size = 0x9000, scoped, tag = 'internal scratch']
  #allocation2 [shape = 'f32[1]{0:T(128)S(6)}', space=smem, size = 0x200, scoped, tag = 'scoped memory for dropblock_forward.3']
  %s0 = inlined_call_operand.<no memory space> [shape: f32[1], index: 0, kind: input, shape index: {}]
  %s1 = inlined_call_operand.vmem [shape: s8[8,384], index: 1, kind: input, shape index: {}]
  %s2 = inlined_call_operand.vmem [shape: f32[8,256], index: 2, kind: input, shape index: {}]
  %s3 = inlined_call_operand.vmem [shape: f32[8,256], index: 3, kind: output, shape index: {}]
  %s4 = sld [smem:[#allocation0]]
  $region22: #{dropblock_forward.3} parent=0
    _
  %s6 = ssub.s32 1, %s4
  %s7 = scalar_select 0, %s6, %s4
  %8 = sst [smem:[#allocation2]] %s0
  // Predicated region
  $region2: #{dropblock_forward.3} parent=0 // pred_check
    _
  $region3: #{dropblock_forward.3} parent=0 // pred_check_branch
    %10 = sbr.rel (0) target = $region5
  $region4: #{dropblock_forward.3} parent=0 // pred_region
    _
  $region5: #{dropblock_forward.3} parent=0 // pred_fallthru
    _
  // Predicated region
  $region6: #{dropblock_forward.3} parent=0 // pred_check
    _
  $region7: #{dropblock_forward.3} parent=0 // pred_check_branch
    %12 = sbr.rel (0) target = $region9
  $region8: #{dropblock_forward.3} parent=0 // pred_region
    _
  $region9: #{dropblock_forward.3} parent=0 // pred_fallthru
    _
  // Predicated region
  $region10: #{dropblock_forward.3} parent=0 // pred_check
    _
  $region11: #{dropblock_forward.3} parent=0 // pred_check_branch
    %14 = sbr.rel (0) target = $region13
  $region12: #{dropblock_forward.3} parent=0 // pred_region
    _
  $region13: #{dropblock_forward.3} parent=0 // pred_fallthru
    _
  %v15 = vld [vmem:[%s1] sm:$0x3f]
  %v16 = vunpack.c.0.s8 %v15
  %v17 = vunpack.c.1.s8 %v15
  %v18 = vunpack.c.2.s8 %v15
  %v19 = vcvt.s32.f32 %v16
  %v20 = vcvt.s32.f32 %v17
  %v21 = vcvt.s32.f32 %v18
  %25 = vrot.lane.b32.xlu0 %v19, 127
  %v26 = vpop.permute.xlu0 %25
  %27 = vrot.lane.b32.xlu0 %v20, 127
  %v28 = vpop.permute.xlu0 %27
  %29 = vrot.lane.b32.xlu0 %v21, 127
  %v30 = vpop.permute.xlu0 %29
  %vm31 = vcmask 1039360
  %v32 = vsel %vm31, %v26, %v28
  %v33 = vsel %vm31, %v28, %v30
  %v37 = vmax.f32 %v19, %v32
  %v38 = vmax.f32 %v20, %v33
  %v39 = vmax.f32 %v21, %v30
  %40 = vrot.lane.b32.xlu0 %v19, 126
  %v41 = vpop.permute.xlu0 %40
  %42 = vrot.lane.b32.xlu0 %v20, 126
  %v43 = vpop.permute.xlu0 %42
  %44 = vrot.lane.b32.xlu0 %v21, 126
  %v45 = vpop.permute.xlu0 %44
  %vm46 = vcmask 1031168
  %v47 = vsel %vm46, %v41, %v43
  %v48 = vsel %vm46, %v43, %v45
  %v52 = vmax.f32 %v37, %v47
  %v53 = vmax.f32 %v38, %v48
  %v54 = vmax.f32 %v39, %v45
  %58 = vrot.lane.b32.xlu0 %v52, 112
  %v59 = vpop.permute.xlu0 %58
  %60 = vrot.lane.b32.xlu0 %v53, 112
  %v61 = vpop.permute.xlu0 %60
  %62 = vrot.lane.b32.xlu0 %v54, 112
  %v63 = vpop.permute.xlu0 %62
  %vm64 = vcmask 916480
  %v65 = vsel %vm64, %v59, %v61
  %v66 = vsel %vm64, %v61, %v63
  %v69 = vmax.f32 %v52, %v65
  %v70 = vmax.f32 %v53, %v66
  %71 = vrot.lane.b32.xlu0 %v52, 96
  %v72 = vpop.permute.xlu0 %71
  %73 = vrot.lane.b32.xlu0 %v53, 96
  %v74 = vpop.permute.xlu0 %73
  %75 = vrot.lane.b32.xlu0 %v54, 96
  %v76 = vpop.permute.xlu0 %75
  %vm77 = vcmask 785408
  %v78 = vsel %vm77, %v72, %v74
  %v79 = vsel %vm77, %v74, %v76
  %v82 = vmax.f32 %v69, %v78
  %v83 = vmax.f32 %v70, %v79
  %v84 = vld [vmem:[%s2] sm:$0xff]
  %v85 = vld [vmem:[%s2 + $0x8] sm:$0xff]
  %s86 = sld [smem:[#allocation2]]
  %v87 = vstv %s86
  %v88 = vmul.f32 %v84, %v87
  %v89 = vmul.f32 %v85, %v87
  %vm90 = vcmp.gt.f32.partialorder %v82, 0.0
  %vm91 = vcmp.gt.f32.partialorder %v83, 0.0
  %v92 = vsel %vm90, 0.0, %v88
  %v93 = vsel %vm91, 0.0, %v89
  %94 = vst [vmem:[%s3] sm:$0xff] %v92
  %95 = vst [vmem:[%s3 + $0x8] sm:$0xff] %v93
  // Predicated region
  $region14: #{dropblock_forward.3} parent=0 // pred_check
    _
  $region15: #{dropblock_forward.3} parent=0 // pred_check_branch
    %97 = sbr.rel (0) target = $region17
  $region16: #{dropblock_forward.3} parent=0 // pred_region
    _
  $region17: #{dropblock_forward.3} parent=0 // pred_fallthru
    _
  // Predicated region
  $region18: #{dropblock_forward.3} parent=0 // pred_check
    _
  $region19: #{dropblock_forward.3} parent=0 // pred_check_branch
    %99 = sbr.rel (0) target = $region21
  $region20: #{dropblock_forward.3} parent=0 // pred_region
    _
  $region21: #{dropblock_forward.3} parent=0 // pred_fallthru
    _

// kernel: dropblock_forward.2
$region0: #{dropblock_forward.2}
  #allocation0 [shape = 'u32[]', space=smem, size = 0x4, offset = 0x4, fixed_abs, tag = 'smem constant byte address 0x4 - core index']
  #allocation1 [shape = 'u32[72,128]{1,0:T(1,128)}', space=vmem, size = 0x9000, scoped, tag = 'internal scratch']
  %s0 = inlined_call_operand.vmem [shape: s8[8,384], index: 0, kind: input, shape index: {}]
  %s1 = inlined_call_operand.hbm [shape: s32[1,1,1], index: 1, kind: output, shape index: {}]
  %s2 = sld [smem:[#allocation0]]
  $region14: #{dropblock_forward.2} parent=0
    _
  %s4 = ssub.s32 1, %s2
  %s5 = scalar_select 0, %s4, %s2
  $region1: #{dropblock_forward.2} parent=0
    #allocation2 [shape = 'u8[512]{0}', space=vmem, size = 0x400, scoped, tag = 'output window, operand 0, single buffered']
    #allocation3 [shape = 's32[1]{0}', space=sflag, size = 0x4, scoped, tag = 'scoped memory for dropblock_forward.2']
    %6 = vsyncpa [#allocation3], 0
    // Predicated region
    $region2: #{dropblock_forward.2} parent=1 // pred_check
      _
    $region3: #{dropblock_forward.2} parent=1 // pred_check_branch
      %8 = sbr.rel (0) target = $region5
    $region4: #{dropblock_forward.2} parent=1 // pred_region
      _
    $region5: #{dropblock_forward.2} parent=1 // pred_fallthru
      _
    %v9 = vld [vmem:[%s0] sm:$0x3f]
    %v10 = vunpack.c.0.s8 %v9
    %v11 = vunpack.c.1.s8 %v9
    %v12 = vunpack.c.2.s8 %v9
    %v13 = vcvt.s32.f32 %v10
    %v14 = vcvt.s32.f32 %v11
    %v15 = vcvt.s32.f32 %v12
    %19 = vrot.lane.b32.xlu0 %v13, 127
    %v20 = vpop.permute.xlu0 %19
    %21 = vrot.lane.b32.xlu0 %v14, 127
    %v22 = vpop.permute.xlu0 %21
    %23 = vrot.lane.b32.xlu0 %v15, 127
    %v24 = vpop.permute.xlu0 %23
    %vm25 = vcmask 1039360
    %v26 = vsel %vm25, %v20, %v22
    %v27 = vsel %vm25, %v22, %v24
    %v31 = vmax.f32 %v13, %v26
    %v32 = vmax.f32 %v14, %v27
    %v33 = vmax.f32 %v15, %v24
    %34 = vrot.lane.b32.xlu0 %v13, 126
    %v35 = vpop.permute.xlu0 %34
    %36 = vrot.lane.b32.xlu0 %v14, 126
    %v37 = vpop.permute.xlu0 %36
    %38 = vrot.lane.b32.xlu0 %v15, 126
    %v39 = vpop.permute.xlu0 %38
    %vm40 = vcmask 1031168
    %v41 = vsel %vm40, %v35, %v37
    %v42 = vsel %vm40, %v37, %v39
    %v46 = vmax.f32 %v31, %v41
    %v47 = vmax.f32 %v32, %v42
    %v48 = vmax.f32 %v33, %v39
    %52 = vrot.lane.b32.xlu0 %v46, 112
    %v53 = vpop.permute.xlu0 %52
    %54 = vrot.lane.b32.xlu0 %v47, 112
    %v55 = vpop.permute.xlu0 %54
    %56 = vrot.lane.b32.xlu0 %v48, 112
    %v57 = vpop.permute.xlu0 %56
    %vm58 = vcmask 916480
    %v59 = vsel %vm58, %v53, %v55
    %v60 = vsel %vm58, %v55, %v57
    %v63 = vmax.f32 %v46, %v59
    %v64 = vmax.f32 %v47, %v60
    %65 = vrot.lane.b32.xlu0 %v46, 96
    %v66 = vpop.permute.xlu0 %65
    %67 = vrot.lane.b32.xlu0 %v47, 96
    %v68 = vpop.permute.xlu0 %67
    %69 = vrot.lane.b32.xlu0 %v48, 96
    %v70 = vpop.permute.xlu0 %69
    %vm71 = vcmask 785408
    %v72 = vsel %vm71, %v66, %v68
    %v73 = vsel %vm71, %v68, %v70
    %v76 = vmax.f32 %v63, %v72
    %v77 = vmax.f32 %v64, %v73
    %v78 = vadd.f32 %v76, %v77
    %79 = vadd.xlane.f32.xlu0 %v78
    %v80 = vpop.xlane.xlu0 %79
    %s81 = smul.u32 0, 8
    %v82 = vlaneseq
    %v83 = vshrl.u32 %v82, 7
    %v84 = vstv %s81
    %v85 = vadd.s32 %v84, %v83
    %vm86 = vcmp.lt.s32.totalorder %v85, 8
    %v87 = vsel %vm86, %v80, 0.0
    %v88 = vrot.slane %v87, 4
    %v89 = vadd.f32 %v87, %v88
    %v90 = vrot.slane %v89, 2
    %v91 = vadd.f32 %v89, %v90
    %v92 = vrot.slane %v91, 1
    %v93 = vadd.f32 %v91, %v92
    %v94 = vcvt.f32.s32.to.zero.pseudo %v93
    %vm95 = vcmask 0
    %96 = vst.msk [vmem:[#allocation2] sm:$0x1] %vm95, %v94
    // Predicated region
    $region6: #{dropblock_forward.2} parent=1 // pred_check
      _
    $region7: #{dropblock_forward.2} parent=1 // pred_check_branch
      %98 = sbr.rel (0) target = $region9
    $region8: #{dropblock_forward.2} parent=1 // pred_region
      %100 = vsyncadd [#allocation3], 0
      %s102 = sshll.u32 [#allocation2], 4
      %s103 = int_to_ptr.vmem [resolvable:$true] %s102
      %s104 = sshll.u32 %s1, 4
      %s105 = int_to_ptr.hbm [resolvable:$true] %s104
      %107 = dma.vmem_to_hbm [thread:$0]  %s103, 16, %s105, [#allocation3]
    $region9: #{dropblock_forward.2} parent=1 // pred_fallthru
      _
    // Predicated region
    $region10: #{dropblock_forward.2} parent=1 // pred_check
      _
    $region11: #{dropblock_forward.2} parent=1 // pred_check_branch
      %109 = sbr.rel (0) target = $region13
    $region12: #{dropblock_forward.2} parent=1 // pred_region
      %111 = dma.done [#allocation3], 16
    $region13: #{dropblock_forward.2} parent=1 // pred_fallthru
      _
    %112 = vsyncpa [#allocation3], 1

</llo_original>
